<compile_context>
chip_gen: v6e
topology: v6e:2x2x1
jax: 0.10.0
libtpu: 0.0.40
codegen_flags: <defaults>
</compile_context>

<pallas_src>
from collections import namedtuple

import jax
import jax.numpy as jnp
from jax.experimental import pallas as pl
from jax.experimental.pallas import tpu as pltpu


# ---------------------------------------------------------------------------
# Tile selection
# ---------------------------------------------------------------------------

# Conservative budget for the double-buffered streaming inputs: fits comfortably
# inside v7x's 64 MiB physical VMEM (and trivially inside v5e/v6e's 128 MiB).
_VMEM_STREAM_BUDGET = 24 * 1024 * 1024
_VMEM_LIMIT_BYTES = 64 * 1024 * 1024


def _pick_tb(B):
    """Batch tile: multiple of 8 (sublane-aligned output store) when possible."""
    if B > 8 and B % 8 == 0:
        return 8
    return B  # full-dim block is always legal


def _pick_ts(S, tb, H, itemsize, n_streams, budget=_VMEM_STREAM_BUDGET):
    """Sequence tile: divisor of S, multiple of 8, sized to the VMEM budget."""
    per_row = max(1, 2 * n_streams * tb * H * itemsize)   # 2 pipeline buffers
    max_ts = max(8, budget // per_row)
    aligned = [t for t in range(8, S + 1, 8) if S % t == 0]
    fitting = [t for t in aligned if t <= max_ts]
    if fitting:
        return max(fitting)
    if aligned:
        return min(aligned)
    return S  # no 8-aligned divisor; fall back to the full (legal) extent


# ---------------------------------------------------------------------------
# Kernels
# ---------------------------------------------------------------------------

def _cls_kernel(h_ref, out_ref):
    # h_ref: (TB, S_blk, H) -- only the first sublane slab of S is DMA'd.
    out_ref[...] = h_ref[:, 0, :]


def _avg_kernel(mask_ref, inv_denom_ref, h_ref, out_ref, acc_ref):
    s = pl.program_id(1)

    @pl.when(s == 0)
    def _init():
        acc_ref[...] = jnp.zeros_like(acc_ref)

    m = mask_ref[...]                                   # (TB, TS, 1) f32
    h = h_ref[...].astype(jnp.float32)                  # (TB, TS, H)
    acc_ref[...] += jnp.sum(h * m, axis=1)              # f32 accumulate

    @pl.when(s == pl.num_programs(1) - 1)
    def _finalize():
        out_ref[...] = (acc_ref[...] * inv_denom_ref[...]).astype(out_ref.dtype)


def _avg_two_kernel(mask_ref, inv_denom_ref, ha_ref, hb_ref, out_ref, acc_ref):
    s = pl.program_id(1)

    @pl.when(s == 0)
    def _init():
        acc_ref[...] = jnp.zeros_like(acc_ref)

    m = mask_ref[...]                                   # (TB, TS, 1) f32
    hsum = ha_ref[...].astype(jnp.float32) + hb_ref[...].astype(jnp.float32)
    acc_ref[...] += jnp.sum(hsum * m, axis=1)           # f32 accumulate

    @pl.when(s == pl.num_programs(1) - 1)
    def _finalize():
        # inv_denom already carries the 0.5 factor for the two-layer average.
        out_ref[...] = (acc_ref[...] * inv_denom_ref[...]).astype(out_ref.dtype)


# ---------------------------------------------------------------------------
# Wrappers
# ---------------------------------------------------------------------------

def pooler_cls(last_hidden):
    B, S, H = last_hidden.shape
    tb = _pick_tb(B)
    s_blk = 8 if S >= 8 else S    # only fetch the first sublane slab of S
    return pl.pallas_call(
        _cls_kernel,
        out_shape=jax.ShapeDtypeStruct((B, H), last_hidden.dtype),
        grid_spec=pltpu.PrefetchScalarGridSpec(
            num_scalar_prefetch=0,
            grid=(B // tb,),
            in_specs=[pl.BlockSpec((tb, s_blk, H), lambda b: (b, 0, 0))],
            out_specs=pl.BlockSpec((tb, H), lambda b: (b, 0)),
        ),
        compiler_params=pltpu.CompilerParams(
            dimension_semantics=("parallel",),
            vmem_limit_bytes=_VMEM_LIMIT_BYTES,
        ),
    )(last_hidden)


def _masked_avg_call(attention_mask, hiddens, scale, s_tile=None):
    """Masked mean over S of sum(hiddens) * scale.  hiddens: 1 or 2 [B,S,H]."""
    B, S, H = hiddens[0].shape
    dtype = hiddens[0].dtype
    itemsize = jnp.dtype(dtype).itemsize

    tb = _pick_tb(B)
    ts = s_tile if s_tile is not None else _pick_ts(S, tb, H, itemsize, len(hiddens))
    assert S % ts == 0 and B % tb == 0
    grid = (B // tb, S // ts)

    # Lane-friendly mask layout + precomputed reciprocal denominator (with the
    # two-layer 0.5 folded into the scale) -- both plain XLA layout plumbing.
    mask_f32 = attention_mask.astype(jnp.float32).reshape(B, S, 1)
    inv_denom = scale / jnp.sum(mask_f32, axis=1)        # [B, 1] f32

    hidden_spec = pl.BlockSpec((tb, ts, H), lambda b, s: (b, s, 0))
    in_specs = [
        pl.BlockSpec((tb, ts, 1), lambda b, s: (b, s, 0)),   # mask
        pl.BlockSpec((tb, 1), lambda b, s: (b, 0)),          # inv_denom
    ] + [hidden_spec] * len(hiddens)

    kernel = _avg_kernel if len(hiddens) == 1 else _avg_two_kernel

    return pl.pallas_call(
        kernel,
        out_shape=jax.ShapeDtypeStruct((B, H), dtype),
        grid_spec=pltpu.PrefetchScalarGridSpec(
            num_scalar_prefetch=0,
            grid=grid,
            in_specs=in_specs,
            out_specs=pl.BlockSpec((tb, H), lambda b, s: (b, 0)),
            scratch_shapes=[pltpu.VMEM((tb, H), jnp.float32)],
        ),
        compiler_params=pltpu.CompilerParams(
            dimension_semantics=("parallel", "arbitrary"),
            vmem_limit_bytes=_VMEM_LIMIT_BYTES,
        ),
    )(mask_f32, inv_denom, *hiddens)


def pooler_avg(attention_mask, last_hidden):
    return _masked_avg_call(attention_mask, (last_hidden,), 1.0)


def pooler_avg_two(attention_mask, hidden_a, hidden_b):
    return _masked_avg_call(attention_mask, (hidden_a, hidden_b), 0.5)


# Mimic the huggingface-style outputs object used by the PyTorch module.
Outputs = namedtuple("Outputs", ["last_hidden_state", "pooler_output", "hidden_states"])


class Pooler:
    """JAX/Pallas port of simcse.models.Pooler (parameter-free)."""

    VALID = ("cls", "cls_before_pooler", "avg", "avg_top2", "avg_first_last")

    def __init__(self, pooler_type):
        assert pooler_type in self.VALID, "unrecognized pooling type %s" % pooler_type
        self.pooler_type = pooler_type

    def __call__(self, attention_mask, outputs):
        last_hidden = outputs.last_hidden_state
        hidden_states = outputs.hidden_states
        if self.pooler_type in ("cls_before_pooler", "cls"):
            return pooler_cls(last_hidden)
        elif self.pooler_type == "avg":
            return pooler_avg(attention_mask, last_hidden)
        elif self.pooler_type == "avg_first_last":
            return pooler_avg_two(attention_mask, hidden_states[0], hidden_states[-1])
        elif self.pooler_type == "avg_top2":
            return pooler_avg_two(attention_mask, hidden_states[-1], hidden_states[-2])
        else:
            raise NotImplementedError


# ---------------------------------------------------------------------------
# Pure-JAX references for verification
# ---------------------------------------------------------------------------

def _ref_avg(mask, h):
    m = mask.astype(jnp.float32)
    return (h.astype(jnp.float32) * m[:, :, None]).sum(1) / m.sum(-1)[:, None]


def _ref_avg_two(mask, ha, hb):
    m = mask.astype(jnp.float32)
    havg = (ha.astype(jnp.float32) + hb.astype(jnp.float32)) / 2.0
    return (havg * m[:, :, None]).sum(1) / m.sum(-1)[:, None]


if __name__ == "__main__":
    # ---- small shapes matching the module's forward ----
    B, S, H, L = 2, 8, 32, 4   # batch, seq, hidden, num hidden layers
    key = jax.random.PRNGKey(0)
    keys = jax.random.split(key, L + 4)

    hidden_states = tuple(
        jax.random.normal(keys[i], (B, S, H), dtype=jnp.float32) for i in range(L)
    )
    last_hidden = hidden_states[-1]
    pooler_output = jax.random.normal(keys[L], (B, H), dtype=jnp.float32)

    # attention mask: 1s followed by padding 0s (per-example lengths)
    lengths = jnp.array([8, 5], dtype=jnp.int32)
    attention_mask = (jnp.arange(S)[None, :] < lengths[:, None]).astype(jnp.float32)

    outputs = Outputs(
        last_hidden_state=last_hidden,
        pooler_output=pooler_output,
        hidden_states=hidden_states,
    )

    out_cls = jax.block_until_ready(Pooler("cls")(attention_mask, outputs))
    assert jnp.allclose(out_cls, last_hidden[:, 0], atol=1e-6)

    out_avg = jax.block_until_ready(Pooler("avg")(attention_mask, outputs))
    assert jnp.allclose(out_avg, _ref_avg(attention_mask, last_hidden), atol=1e-5)

    out_fl = jax.block_until_ready(Pooler("avg_first_last")(attention_mask, outputs))
    assert jnp.allclose(
        out_fl, _ref_avg_two(attention_mask, hidden_states[0], hidden_states[-1]),
        atol=1e-5,
    )

    out_t2 = jax.block_until_ready(Pooler("avg_top2")(attention_mask, outputs))
    assert jnp.allclose(
        out_t2, _ref_avg_two(attention_mask, hidden_states[-1], hidden_states[-2]),
        atol=1e-5,
    )

    # ---- larger aligned shapes to exercise the tiled S-reduction grid ----
    B2, S2, H2 = 8, 64, 128
    ka, kb, km = jax.random.split(keys[L + 1], 3)
    ha = jax.random.normal(ka, (B2, S2, H2), dtype=jnp.float32)
    hb = jax.random.normal(kb, (B2, S2, H2), dtype=jnp.float32)
    lens2 = jax.random.randint(km, (B2,), 1, S2 + 1)
    mask2 = (jnp.arange(S2)[None, :] < lens2[:, None]).astype(jnp.float32)

    # Force 4 S-tiles so init/accumulate/finalize over the reduction axis runs.
    out_avg2 = jax.block_until_ready(_masked_avg_call(mask2, (ha,), 1.0, s_tile=16))
    assert jnp.allclose(out_avg2, _ref_avg(mask2, ha), atol=1e-4)

    out_two2 = jax.block_until_ready(_masked_avg_call(mask2, (ha, hb), 0.5, s_tile=16))
    assert jnp.allclose(out_two2, _ref_avg_two(mask2, ha, hb), atol=1e-4)

    print("KERNEL_OK")
</pallas_src>

<mosaic_0001>
module attributes {stable_mosaic.version = 11 : i64} {
  func.func @_cls_kernel(%arg0: i32, %arg1: memref<2x8x32xf32, #tpu.memory_space<vmem>>, %arg2: memref<2x32xf32, #tpu.memory_space<vmem>>) attributes {dimension_semantics = [#tpu.dimension_semantics<parallel>], iteration_bounds = array<i64: 1>, scalar_prefetch = 0 : i64, scratch_operands = 0 : i64, tpu.core_type = #tpu.core_type<tc>, window_params = [{transform_indices = @transform_0, window_bounds = array<i64: 2, 8, 32>}, {transform_indices = @transform_1, window_bounds = array<i64: 2, 32>}]} {
    %c0 = arith.constant 0 : index
    %c0_0 = arith.constant 0 : index
    %c0_1 = arith.constant 0 : index
    %0 = vector.load %arg1[%c0, %c0_0, %c0_1] : memref<2x8x32xf32, #tpu.memory_space<vmem>>, vector<2x1x32xf32>
    %1 = vector.shape_cast %0 : vector<2x1x32xf32> to vector<2x32xf32>
    %c0_2 = arith.constant 0 : index
    %c0_3 = arith.constant 0 : index
    %2 = vector.load %arg2[%c0_2, %c0_3] : memref<2x32xf32, #tpu.memory_space<vmem>>, vector<2x32xf32>
    tpu.vector_store %arg2[%c0_2, %c0_3], %1 {strides = array<i32>} : memref<2x32xf32, #tpu.memory_space<vmem>>, vector<2x32xf32>,
    return
  }
  func.func @transform_0(%arg0: i32) -> (i32, i32, i32) {
    %c0_i32 = arith.constant 0 : i32
    %c0_i32_0 = arith.constant 0 : i32
    %c0_i32_1 = arith.constant 0 : i32
    return %arg0, %c0_i32, %c0_i32_0 : i32, i32, i32
  }
  func.func @transform_1(%arg0: i32) -> (i32, i32) {
    %c0_i32 = arith.constant 0 : i32
    %c0_i32_0 = arith.constant 0 : i32
    return %arg0, %c0_i32 : i32, i32
  }
}

</mosaic_0001>

<llo_original>
// kernel: tpu_custom_call.1
$region0: #{tpu_custom_call.1}
  #allocation0 [shape = 'u32[]', space=smem, size = 0x4, offset = 0x4, fixed_abs, tag = 'smem constant byte address 0x4 - core index']
  #allocation1 [shape = 'u32[144,128]{1,0:T(1,128)}', space=vmem, size = 0x12000, scoped, tag = 'internal scratch']
  %s0 = inlined_call_operand.hbm [shape: f32[2,8,32], index: 0, kind: input, shape index: {}]
  %s1 = inlined_call_operand.hbm [shape: f32[2,32], index: 1, kind: output, shape index: {}]
  %s2 = sld [smem:[#allocation0]]
  $region18: #{tpu_custom_call.1} parent=0
    _
  %s4 = ssub.s32 1, %s2
  %s5 = scalar_select 0, %s4, %s2
  $region1: #{tpu_custom_call.1} parent=0
    #allocation2 [shape = 'u8[8192]{0}', space=vmem, size = 0x2000, scoped, tag = 'input window, operand 0, single buffered']
    #allocation3 [shape = 's32[1]{0}', space=sflag, size = 0x4, scoped, tag = 'scoped memory for tpu_custom_call.1']
    #allocation4 [shape = 's32[1]{0}', space=sflag, size = 0x4, scoped, tag = 'scoped memory for tpu_custom_call.1']
    #allocation5 [shape = 'u8[1024]{0}', space=vmem, size = 0x400, scoped, tag = 'output window, operand 0, single buffered']
    %6 = vsyncpa [#allocation3], 0
    %7 = vsyncpa [#allocation4], 0
    // Predicated region
    $region2: #{tpu_custom_call.1} parent=1 // pred_check
      _
    $region3: #{tpu_custom_call.1} parent=1 // pred_check_branch
      %9 = sbr.rel (0) target = $region5
    $region4: #{tpu_custom_call.1} parent=1 // pred_region
      %s11 = ssub.s32 256, 256
      %12 = vsyncadd [#allocation3], %s11
      %s13 = sshll.u32 [#allocation2], 4
      %s14 = int_to_ptr.vmem [resolvable:$true] %s13
      %19 = dma.hbm_to_vmem [thread:$0]  %s0, 256, %s14, [#allocation3], 128, 128, 8
    $region5: #{tpu_custom_call.1} parent=1 // pred_fallthru
      _
    // Predicated region
    $region6: #{tpu_custom_call.1} parent=1 // pred_check
      _
    $region7: #{tpu_custom_call.1} parent=1 // pred_check_branch
      %21 = sbr.rel (0) target = $region9
    $region8: #{tpu_custom_call.1} parent=1 // pred_region
      %22 = dma.done [#allocation3], 256
    $region9: #{tpu_custom_call.1} parent=1 // pred_fallthru
      _
    %v23 = vld [vmem:[#allocation2] sm:$0x1]
    %v24 = vld [vmem:[#allocation2 + $0x8] sm:$0x1]
    %v27 = vrot.slane %v24, 7
    %vm28 = vcmask 1041409
    %v29 = vsel %vm28, %v27, %v23
    %vm31 = vcmask 254976
    %32 = vst.msk [vmem:[#allocation5] sm:$0x3] %vm31, %v29
    // Predicated region
    $region10: #{tpu_custom_call.1} parent=1 // pred_check
      _
    $region11: #{tpu_custom_call.1} parent=1 // pred_check_branch
      %34 = sbr.rel (0) target = $region13
    $region12: #{tpu_custom_call.1} parent=1 // pred_region
      %s36 = ssub.s32 32, 32
      %37 = vsyncadd [#allocation4], %s36
      %s39 = sshll.u32 [#allocation5], 4
      %s40 = int_to_ptr.vmem [resolvable:$true] %s39
      %42 = dma.vmem_to_hbm [thread:$0]  %s40, 32, %s1, [#allocation4]
    $region13: #{tpu_custom_call.1} parent=1 // pred_fallthru
      _
    // Predicated region
    $region14: #{tpu_custom_call.1} parent=1 // pred_check
      _
    $region15: #{tpu_custom_call.1} parent=1 // pred_check_branch
      %44 = sbr.rel (0) target = $region17
    $region16: #{tpu_custom_call.1} parent=1 // pred_region
      %45 = dma.done [#allocation4], 32
    $region17: #{tpu_custom_call.1} parent=1 // pred_fallthru
      _
    %46 = vsyncpa [#allocation3], 1
    %47 = vsyncpa [#allocation4], 1

</llo_original>
